<compile_context>
chip_gen: v7x
topology: tpu7x:2x2x1
jax: 0.10.0
libtpu: 0.0.40
codegen_flags: <defaults>
</compile_context>

<pallas_src>
import functools

import jax
import jax.numpy as jnp
from jax.experimental import pallas as pl
from jax.experimental.pallas import tpu as pltpu


def _dense_block_kernel(x_ref, w1_ref, w0_ref, b_ref, out_ref, *,
                        in_dim, filters, dilation):
    """Single time tile covering the whole sequence (no halo needed)."""
    C, F, d = in_dim, filters, dilation
    x = x_ref[0]                                           # (C, T)
    T = x.shape[-1]

    if d >= T:
        # Every shifted tap reads left of t=0 -> contributes only the bias.
        xfg = (jnp.dot(w1_ref[...], x, preferred_element_type=jnp.float32)
               + b_ref[...])
    else:
        x_shift = jnp.concatenate(
            [jnp.zeros((C, d), dtype=x.dtype), x[:, :T - d]], axis=1)
        xfg = (jnp.dot(w1_ref[...], x, preferred_element_type=jnp.float32)
               + jnp.dot(w0_ref[...], x_shift, preferred_element_type=jnp.float32)
               + b_ref[...])

    act = jnp.tanh(xfg[:F, :]) * jax.nn.sigmoid(xfg[F:, :])
    out_ref[0, :C, :] = x.astype(out_ref.dtype)            # pass-through of x
    out_ref[0, C:, :] = act.astype(out_ref.dtype)


def _dense_block_kernel_tiled(x_ref, xprev_ref, w1_ref, w0_ref, b_ref, out_ref, *,
                              in_dim, filters, dilation):
    """Time-tiled variant: the causal halo comes from the previous time tile."""
    C, F, d = in_dim, filters, dilation
    ti = pl.program_id(1)
    x = x_ref[0]                                           # (C, TILE_T)
    tile_t = x.shape[-1]

    # x_shift[:, j] == x_global[:, t - d]  with zeros for global t < d.
    prev_tail = xprev_ref[0, :, tile_t - d:]               # (C, d)
    prev_tail = prev_tail * (ti > 0).astype(x.dtype)       # tile 0: causal zeros
    x_shift = jnp.concatenate([prev_tail, x[:, :tile_t - d]], axis=1)

    xfg = (jnp.dot(w1_ref[...], x, preferred_element_type=jnp.float32)
           + jnp.dot(w0_ref[...], x_shift, preferred_element_type=jnp.float32)
           + b_ref[...])

    act = jnp.tanh(xfg[:F, :]) * jax.nn.sigmoid(xfg[F:, :])
    out_ref[0, :C, :] = x.astype(out_ref.dtype)
    out_ref[0, C:, :] = act.astype(out_ref.dtype)


def _pick_tile_t(T, d):
    # Tile time only with lane-aligned blocks (multiples of 128) and only if the
    # causal halo (d columns) fits entirely inside the previous tile.
    for cand in (1024, 512, 256, 128):
        if T % cand == 0 and T > cand and d < cand:
            return cand
    return T


@functools.partial(jax.jit, static_argnames=("dilation",))
def dense_block_forward(x_bct, wf, bf, wg, bg, *, dilation):
    """x_bct: (B, C, T) as in the PyTorch module.  Returns (B, C + F, T)."""
    B, C, T = x_bct.shape
    F = wf.shape[0]
    d = int(dilation)

    # Fuse the f/g gates: one (2F, C) weight per conv tap plus a fused bias.
    # PyTorch Conv1d weight is (F, C, 2): tap 0 hits x[t-d], tap 1 hits x[t].
    w1 = jnp.concatenate([wf[:, :, 1], wg[:, :, 1]], axis=0)     # (2F, C)
    w0 = jnp.concatenate([wf[:, :, 0], wg[:, :, 0]], axis=0)     # (2F, C)
    b = jnp.concatenate([bf, bg], axis=0).reshape(2 * F, 1)      # (2F, 1)

    tile_t = _pick_tile_t(T, d)
    nt = T // tile_t

    x_spec = pl.BlockSpec((1, C, tile_t), lambda bi, ti: (bi, 0, ti))
    w_specs = [
        pl.BlockSpec((2 * F, C), lambda bi, ti: (0, 0)),
        pl.BlockSpec((2 * F, C), lambda bi, ti: (0, 0)),
        pl.BlockSpec((2 * F, 1), lambda bi, ti: (0, 0)),
    ]
    out_spec = pl.BlockSpec((1, C + F, tile_t), lambda bi, ti: (bi, 0, ti))

    if nt > 1:
        kernel = functools.partial(_dense_block_kernel_tiled,
                                   in_dim=C, filters=F, dilation=d)
        xprev_spec = pl.BlockSpec(
            (1, C, tile_t), lambda bi, ti: (bi, 0, jnp.maximum(ti - 1, 0)))
        in_specs = [x_spec, xprev_spec] + w_specs
        args = (x_bct, x_bct, w1, w0, b)
    else:
        kernel = functools.partial(_dense_block_kernel,
                                   in_dim=C, filters=F, dilation=d)
        in_specs = [x_spec] + w_specs
        args = (x_bct, w1, w0, b)

    return pl.pallas_call(
        kernel,
        out_shape=jax.ShapeDtypeStruct((B, C + F, T), x_bct.dtype),
        grid_spec=pltpu.PrefetchScalarGridSpec(
            num_scalar_prefetch=0,
            grid=(B, nt),
            in_specs=in_specs,
            out_specs=out_spec,
        ),
        compiler_params=pltpu.CompilerParams(
            dimension_semantics=("parallel", "parallel")),
    )(*args)


def _reference_forward(x_bct, wf, bf, wg, bg, dilation):
    """Pure-JAX reference implementing the same causal dilated k=2 conv."""
    B, C, T = x_bct.shape
    d = dilation
    x_btc = jnp.transpose(x_bct, (0, 2, 1))
    xs_btc = jnp.pad(x_btc, ((0, 0), (d, 0), (0, 0)))[:, :T, :]
    xf = (jnp.einsum("btc,fc->btf", x_btc, wf[:, :, 1])
          + jnp.einsum("btc,fc->btf", xs_btc, wf[:, :, 0]) + bf)
    xg = (jnp.einsum("btc,fc->btf", x_btc, wg[:, :, 1])
          + jnp.einsum("btc,fc->btf", xs_btc, wg[:, :, 0]) + bg)
    act = jnp.tanh(xf) * jax.nn.sigmoid(xg)
    return jnp.concatenate([x_bct, jnp.transpose(act, (0, 2, 1))], axis=1)


if __name__ == "__main__":
    def run_case(case_key, B, C, T, F, d):
        kx, kwf, kbf, kwg, kbg = jax.random.split(case_key, 5)
        x = jax.random.normal(kx, (B, C, T), dtype=jnp.float32)
        # Deterministic init mimicking nn.Conv1d default (uniform +/- 1/sqrt(C*k)).
        bound = 1.0 / (C * 2) ** 0.5
        wf = jax.random.uniform(kwf, (F, C, 2), jnp.float32, -bound, bound)
        bf = jax.random.uniform(kbf, (F,), jnp.float32, -bound, bound)
        wg = jax.random.uniform(kwg, (F, C, 2), jnp.float32, -bound, bound)
        bg = jax.random.uniform(kbg, (F,), jnp.float32, -bound, bound)

        out = jax.block_until_ready(
            dense_block_forward(x, wf, bf, wg, bg, dilation=d))
        ref = _reference_forward(x, wf, bf, wg, bg, d)
        assert out.shape == (B, C + F, T), out.shape
        assert jnp.allclose(out, ref, atol=1e-5, rtol=1e-5), \
            f"mismatch vs reference (T={T}, d={d})"

    key = jax.random.PRNGKey(0)
    keys = jax.random.split(key, 4)

    # Primary small case (untiled path), consistent with the module.
    run_case(keys[0], 2, 4, 16, 8, 2)
    # Dilation >= T: the shifted tap is entirely the causal zero padding.
    run_case(keys[1], 2, 4, 16, 8, 16)
    # Time-tiled path (TILE_T = 128) with a small cross-tile halo.
    run_case(keys[2], 2, 4, 256, 8, 2)
    # Time-tiled path with a large cross-tile halo (d = 100 < TILE_T).
    run_case(keys[3], 2, 4, 256, 8, 100)

    print("KERNEL_OK")
</pallas_src>

<mosaic_0001>
module attributes {stable_mosaic.version = 11 : i64} {
  func.func @_dense_block_kernel(%arg0: i32, %arg1: i32, %arg2: memref<1x4x16xf32, #tpu.memory_space<vmem>>, %arg3: memref<16x4xf32, #tpu.memory_space<vmem>>, %arg4: memref<16x4xf32, #tpu.memory_space<vmem>>, %arg5: memref<16x1xf32, #tpu.memory_space<vmem>>, %arg6: memref<1x12x16xf32, #tpu.memory_space<vmem>>) attributes {dimension_semantics = [#tpu.dimension_semantics<parallel>, #tpu.dimension_semantics<parallel>], iteration_bounds = array<i64: 2, 1>, scalar_prefetch = 0 : i64, scratch_operands = 0 : i64, tpu.core_type = #tpu.core_type<tc>, window_params = [{transform_indices = @transform_0, window_bounds = array<i64: 1, 4, 16>}, {pipeline_mode = #tpu.pipeline_mode<synchronous>, transform_indices = @transform_1, window_bounds = array<i64: 16, 4>}, {pipeline_mode = #tpu.pipeline_mode<synchronous>, transform_indices = @transform_2, window_bounds = array<i64: 16, 4>}, {pipeline_mode = #tpu.pipeline_mode<synchronous>, transform_indices = @transform_3, window_bounds = array<i64: 16, 1>}, {transform_indices = @transform_4, window_bounds = array<i64: 1, 12, 16>}]} {
    %c0 = arith.constant 0 : index
    %c0_0 = arith.constant 0 : index
    %c0_1 = arith.constant 0 : index
    %0 = vector.load %arg2[%c0, %c0_0, %c0_1] : memref<1x4x16xf32, #tpu.memory_space<vmem>>, vector<1x4x16xf32>
    %1 = vector.shape_cast %0 : vector<1x4x16xf32> to vector<4x16xf32>
    %cst = arith.constant 0.000000e+00 : f32
    %2 = vector.broadcast %cst : f32 to vector<4x2xf32>
    %3 = vector.extract_strided_slice %1 {offsets = [0, 0], sizes = [4, 14], strides = [1, 1]} : vector<4x16xf32> to vector<4x14xf32>
    %4 = tpu.concatenate %2, %3 in 1 : vector<4x2xf32>, vector<4x14xf32> -> vector<4x16xf32>
    %c0_2 = arith.constant 0 : index
    %c0_3 = arith.constant 0 : index
    %5 = vector.load %arg3[%c0_2, %c0_3] : memref<16x4xf32, #tpu.memory_space<vmem>>, vector<16x4xf32>
    %cst_4 = arith.constant dense<0.000000e+00> : vector<16x16xf32>
    %6 = tpu.matmul %5, %1, %cst_4 {dimension_numbers = #tpu.dot_dimension_numbers<[1], [0], [0], [1], [0, 0, 1, 1], [], []>} : vector<16x4xf32>, vector<4x16xf32>, vector<16x16xf32> -> vector<16x16xf32>
    %c0_5 = arith.constant 0 : index
    %c0_6 = arith.constant 0 : index
    %7 = vector.load %arg4[%c0_5, %c0_6] : memref<16x4xf32, #tpu.memory_space<vmem>>, vector<16x4xf32>
    %cst_7 = arith.constant dense<0.000000e+00> : vector<16x16xf32>
    %8 = tpu.matmul %7, %4, %cst_7 {dimension_numbers = #tpu.dot_dimension_numbers<[1], [0], [0], [1], [0, 0, 1, 1], [], []>} : vector<16x4xf32>, vector<4x16xf32>, vector<16x16xf32> -> vector<16x16xf32>
    %9 = arith.addf %6, %8 : vector<16x16xf32>
    %c0_8 = arith.constant 0 : index
    %c0_9 = arith.constant 0 : index
    %10 = vector.load %arg5[%c0_8, %c0_9] : memref<16x1xf32, #tpu.memory_space<vmem>>, vector<16x1xf32>
    %11 = vector.broadcast %10 : vector<16x1xf32> to vector<16x16xf32>
    %12 = arith.addf %9, %11 : vector<16x16xf32>
    %13 = vector.extract_strided_slice %12 {offsets = [0, 0], sizes = [8, 16], strides = [1, 1]} : vector<16x16xf32> to vector<8x16xf32>
    %14 = math.tanh %13 : vector<8x16xf32>
    %15 = vector.extract_strided_slice %12 {offsets = [8, 0], sizes = [8, 16], strides = [1, 1]} : vector<16x16xf32> to vector<8x16xf32>
    %16 = arith.negf %15 : vector<8x16xf32>
    %17 = math.exp %16 : vector<8x16xf32>
    %cst_10 = arith.constant 1.000000e+00 : f32
    %18 = vector.broadcast %cst_10 : f32 to vector<8x16xf32>
    %19 = arith.addf %18, %17 : vector<8x16xf32>
    %20 = arith.divf %18, %19 : vector<8x16xf32>
    %21 = arith.mulf %14, %20 : vector<8x16xf32>
    %c0_11 = arith.constant 0 : index
    %c0_12 = arith.constant 0 : index
    %c0_13 = arith.constant 0 : index
    %22 = vector.load %arg6[%c0_11, %c0_12, %c0_13] : memref<1x12x16xf32, #tpu.memory_space<vmem>>, vector<1x4x16xf32>
    %23 = vector.shape_cast %22 : vector<1x4x16xf32> to vector<4x16xf32>
    %24 = vector.shape_cast %1 : vector<4x16xf32> to vector<1x4x16xf32>
    tpu.vector_store %arg6[%c0_11, %c0_12, %c0_13], %24 {strides = array<i32>} : memref<1x12x16xf32, #tpu.memory_space<vmem>>, vector<1x4x16xf32>,
    %c0_14 = arith.constant 0 : index
    %c4 = arith.constant 4 : index
    %c0_15 = arith.constant 0 : index
    %25 = vector.load %arg6[%c0_14, %c4, %c0_15] : memref<1x12x16xf32, #tpu.memory_space<vmem>>, vector<1x8x16xf32>
    %26 = vector.shape_cast %25 : vector<1x8x16xf32> to vector<8x16xf32>
    %27 = vector.shape_cast %21 : vector<8x16xf32> to vector<1x8x16xf32>
    tpu.vector_store %arg6[%c0_14, %c4, %c0_15], %27 {strides = array<i32>} : memref<1x12x16xf32, #tpu.memory_space<vmem>>, vector<1x8x16xf32>,
    return
  }
  func.func @transform_0(%arg0: i32, %arg1: i32) -> (i32, i32, i32) {
    %c0_i32 = arith.constant 0 : i32
    %c0_i32_0 = arith.constant 0 : i32
    return %arg0, %c0_i32, %arg1 : i32, i32, i32
  }
  func.func @transform_1(%arg0: i32, %arg1: i32) -> (i32, i32) {
    %c0_i32 = arith.constant 0 : i32
    %c0_i32_0 = arith.constant 0 : i32
    %c0_i32_1 = arith.constant 0 : i32
    return %c0_i32, %c0_i32_0 : i32, i32
  }
  func.func @transform_2(%arg0: i32, %arg1: i32) -> (i32, i32) {
    %c0_i32 = arith.constant 0 : i32
    %c0_i32_0 = arith.constant 0 : i32
    %c0_i32_1 = arith.constant 0 : i32
    return %c0_i32, %c0_i32_0 : i32, i32
  }
  func.func @transform_3(%arg0: i32, %arg1: i32) -> (i32, i32) {
    %c0_i32 = arith.constant 0 : i32
    %c0_i32_0 = arith.constant 0 : i32
    %c0_i32_1 = arith.constant 0 : i32
    return %c0_i32, %c0_i32_0 : i32, i32
  }
  func.func @transform_4(%arg0: i32, %arg1: i32) -> (i32, i32, i32) {
    %c0_i32 = arith.constant 0 : i32
    %c0_i32_0 = arith.constant 0 : i32
    return %arg0, %c0_i32, %arg1 : i32, i32, i32
  }
}

</mosaic_0001>

<llo_original>
// kernel: dense_block_forward.1
$region0: #{dense_block_forward.1}
  #allocation0 [shape = 'u32[]', space=smem, size = 0x4, offset = 0x4, fixed_abs, tag = 'smem constant byte address 0x4 - core index']
  #allocation1 [shape = 'u32[144,128]{1,0:T(1,128)}', space=vmem, size = 0x12000, scoped, tag = 'internal scratch']
  %s0 = inlined_call_operand.vmem [shape: f32[2,4,16], index: 0, kind: input, shape index: {}]
  %s1 = inlined_call_operand.vmem [shape: f32[16,4], index: 1, kind: input, shape index: {}]
  %s2 = inlined_call_operand.vmem [shape: f32[16,4], index: 2, kind: input, shape index: {}]
  %s3 = inlined_call_operand.vmem [shape: f32[16,1], index: 3, kind: input, shape index: {}]
  %s4 = inlined_call_operand.vmem [shape: f32[2,12,16], index: 4, kind: output, shape index: {}]
  %s5 = sld [smem:[#allocation0]]
  $region49: #{dense_block_forward.1} parent=0
    _
  %s7 = ssub.s32 1, %s5
  %s8 = scalar_select 0, %s7, %s5
  loop: start=0, step=1, limit=4
  $region2: #{dense_block_forward.1} parent=0 // loop_pre_header
    _
  $region3: #{dense_block_forward.1} parent=0 // loop_header
    %s10 = sphi 0, %s14
    %p11 = scmp.ge.s32.totalorder %s10, 4
    %s17 = sphi 0, %s29
    %s18 = sphi 0, %s25
    %s19 = sphi 0, %s17
    %s20 = sphi 0, %s18
    %s21 = sphi 0, %s19
    %s22 = sphi 0, %s20
    %s34 = sphi 0, %s36
    %s37 = sphi 0, %s34
    %s38 = sphi 0, %s37
    %s54 = sphi 0, %s38
    %s58 = sphi 0, %s58
    %s60 = sphi 0, %s58
    %s61 = sphi 0, %s60
    %s75 = sphi 0, %s61
    %s79 = sphi 0, %s79
    %s81 = sphi 0, %s79
    %s82 = sphi 0, %s81
    %s96 = sphi 0, %s82
    %s100 = sphi 0, %s100
    %s102 = sphi 0, %s100
    %s103 = sphi 0, %s102
    %s117 = sphi 0, %s103
    %s125 = sphi 0, %s127
    %s128 = sphi 0, %s125
    %s129 = sphi 0, %s128
    %s145 = sphi 0, %s129
  $region4: #{dense_block_forward.1} parent=0 // loop_header_branch
    %13 = sbr.rel (%p11) target = $region8
  $region5: #{dense_block_forward.1} parent=0 // loop_body
    %s15 = ssub.s32 %s10, 1
    %s16 = ssub.s32 %s10, 2
    %s23 = sadd.s32 1, %s18
    %p24 = scmp.ge.s32.totalorder %s23, 1
    %s25 = scalar_select %p24, 0, %s23
    %s26 = sadd.s32 1, %s17
    %s27 = scalar_select %p24, %s26, %s17
    %p28 = scmp.ge.s32.totalorder %s27, 2
    %s29 = scalar_select %p28, 0, %s27
    %s30 = ssub.s32 %s17, %s29
    %s31 = ssub.s32 %s18, %s25
    %s32 = sor.u32 %s30, %s31
    %p33 = scmp.eq.s32.totalorder %s32, 0
    %s35 = sadd.s32 %s34, 1
    %s36 = scalar_select %p33, %s34, %s35
    %p39 = pneg %p33
    %p40 = scmp.eq.s32.totalorder %s10, 1
    %p41 = por %p39, %p40
    %p42 = scmp.ne.s32.totalorder %s34, %s37
    %p43 = scmp.eq.s32.totalorder %s10, 0
    %p44 = por %p42, %p43
    %p45 = scmp.ne.s32.totalorder %s34, %s37
    %p46 = scmp.eq.s32.totalorder %s15, 1
    %p47 = por %p45, %p46
    %p48 = scmp.ne.s32.totalorder %s37, %s38
    %p49 = scmp.eq.s32.totalorder %s15, 0
    %p50 = por %p48, %p49
    %p51 = scmp.ne.s32.totalorder %s37, %s38
    %p52 = scmp.eq.s32.totalorder %s16, 1
    %p53 = por %p51, %p52
    %p55 = scmp.ne.s32.totalorder %s38, %s54
    %p56 = scmp.eq.s32.totalorder %s16, 0
    %p57 = por %p55, %p56
    %s59 = sadd.s32 %s58, 1
    %p62 = scmp.eq.s32.totalorder %s10, 1
    %p63 = scmp.ne.s32.totalorder %s58, %s60
    %p64 = scmp.eq.s32.totalorder %s10, 0
    %p65 = por %p63, %p64
    %p66 = scmp.ne.s32.totalorder %s58, %s60
    %p67 = scmp.eq.s32.totalorder %s15, 1
    %p68 = por %p66, %p67
    %p69 = scmp.ne.s32.totalorder %s60, %s61
    %p70 = scmp.eq.s32.totalorder %s15, 0
    %p71 = por %p69, %p70
    %p72 = scmp.ne.s32.totalorder %s60, %s61
    %p73 = scmp.eq.s32.totalorder %s16, 1
    %p74 = por %p72, %p73
    %p76 = scmp.ne.s32.totalorder %s61, %s75
    %p77 = scmp.eq.s32.totalorder %s16, 0
    %p78 = por %p76, %p77
    %s80 = sadd.s32 %s79, 1
    %p83 = scmp.eq.s32.totalorder %s10, 1
    %p84 = scmp.ne.s32.totalorder %s79, %s81
    %p85 = scmp.eq.s32.totalorder %s10, 0
    %p86 = por %p84, %p85
    %p87 = scmp.ne.s32.totalorder %s79, %s81
    %p88 = scmp.eq.s32.totalorder %s15, 1
    %p89 = por %p87, %p88
    %p90 = scmp.ne.s32.totalorder %s81, %s82
    %p91 = scmp.eq.s32.totalorder %s15, 0
    %p92 = por %p90, %p91
    %p93 = scmp.ne.s32.totalorder %s81, %s82
    %p94 = scmp.eq.s32.totalorder %s16, 1
    %p95 = por %p93, %p94
    %p97 = scmp.ne.s32.totalorder %s82, %s96
    %p98 = scmp.eq.s32.totalorder %s16, 0
    %p99 = por %p97, %p98
    %s101 = sadd.s32 %s100, 1
    %p104 = scmp.eq.s32.totalorder %s10, 1
    %p105 = scmp.ne.s32.totalorder %s100, %s102
    %p106 = scmp.eq.s32.totalorder %s10, 0
    %p107 = por %p105, %p106
    %p108 = scmp.ne.s32.totalorder %s100, %s102
    %p109 = scmp.eq.s32.totalorder %s15, 1
    %p110 = por %p108, %p109
    %p111 = scmp.ne.s32.totalorder %s102, %s103
    %p112 = scmp.eq.s32.totalorder %s15, 0
    %p113 = por %p111, %p112
    %p114 = scmp.ne.s32.totalorder %s102, %s103
    %p115 = scmp.eq.s32.totalorder %s16, 1
    %p116 = por %p114, %p115
    %p118 = scmp.ne.s32.totalorder %s103, %s117
    %p119 = scmp.eq.s32.totalorder %s16, 0
    %p120 = por %p118, %p119
    %s121 = ssub.s32 %s17, %s29
    %s122 = ssub.s32 %s18, %s25
    %s123 = sor.u32 %s121, %s122
    %p124 = scmp.eq.s32.totalorder %s123, 0
    %s126 = sadd.s32 %s125, 1
    %s127 = scalar_select %p124, %s125, %s126
    %p130 = pneg %p124
    %p131 = scmp.eq.s32.totalorder %s10, 1
    %p132 = por %p130, %p131
    %p133 = scmp.ne.s32.totalorder %s125, %s128
    %p134 = scmp.eq.s32.totalorder %s10, 0
    %p135 = por %p133, %p134
    %p136 = scmp.ne.s32.totalorder %s125, %s128
    %p137 = scmp.eq.s32.totalorder %s15, 1
    %p138 = por %p136, %p137
    %p139 = scmp.ne.s32.totalorder %s128, %s129
    %p140 = scmp.eq.s32.totalorder %s15, 0
    %p141 = por %p139, %p140
    %p142 = scmp.ne.s32.totalorder %s128, %s129
    %p143 = scmp.eq.s32.totalorder %s16, 1
    %p144 = por %p142, %p143
    %p146 = scmp.ne.s32.totalorder %s129, %s145
    %p147 = scmp.eq.s32.totalorder %s16, 0
    %p148 = por %p146, %p147
    %p149 = scmp.le.s32.totalorder 1, %s10
    %p150 = scmp.lt.s32.totalorder %s10, 3
    %p151 = pnand %p149, %p150
    %p152 = pneg %p151
    // Predicated region
    $region9: #{dense_block_forward.1} parent=5 // pred_check
      _
    $region10: #{dense_block_forward.1} parent=5 // pred_check_branch
      %154 = sbr.rel (%p151) target = $region12
    $region11: #{dense_block_forward.1} parent=5 // pred_region
      %s155 = ssub.s32 %s10, 1
      // Predicated region
      $region13: #{dense_block_forward.1} parent=11 // pred_check
        %p156 = pneg %p71
      $region14: #{dense_block_forward.1} parent=11 // pred_check_branch
        %158 = sbr.rel (%p156) target = $region16
      $region15: #{dense_block_forward.1} parent=11 // pred_region
        _
      $region16: #{dense_block_forward.1} parent=11 // pred_fallthru
        _
      // Predicated region
      $region17: #{dense_block_forward.1} parent=11 // pred_check
        %p159 = pneg %p92
      $region18: #{dense_block_forward.1} parent=11 // pred_check_branch
        %161 = sbr.rel (%p159) target = $region20
      $region19: #{dense_block_forward.1} parent=11 // pred_region
        _
      $region20: #{dense_block_forward.1} parent=11 // pred_fallthru
        _
      // Predicated region
      $region21: #{dense_block_forward.1} parent=11 // pred_check
        %p162 = pneg %p113
      $region22: #{dense_block_forward.1} parent=11 // pred_check_branch
        %164 = sbr.rel (%p162) target = $region24
      $region23: #{dense_block_forward.1} parent=11 // pred_region
        _
      $region24: #{dense_block_forward.1} parent=11 // pred_fallthru
        _
    $region12: #{dense_block_forward.1} parent=5 // pred_fallthru
      _
    %p165 = scmp.lt.s32.totalorder %s10, 2
    // Predicated region
    $region25: #{dense_block_forward.1} parent=5 // pred_check
      %p166 = pneg %p165
    $region26: #{dense_block_forward.1} parent=5 // pred_check_branch
      %168 = sbr.rel (%p166) target = $region28
    $region27: #{dense_block_forward.1} parent=5 // pred_region
      // Predicated region
      $region29: #{dense_block_forward.1} parent=27 // pred_check
        %p169 = pneg %p44
      $region30: #{dense_block_forward.1} parent=27 // pred_check_branch
        %171 = sbr.rel (%p169) target = $region32
      $region31: #{dense_block_forward.1} parent=27 // pred_region
        %p172 = scmp.lt.s32.totalorder %s17, 1
        %s173 = scalar_select %p172, %s17, 1
        %p174 = scmp.lt.s32.totalorder %s18, 0
        %s175 = scalar_select %p174, %s18, 0
        %s176 = sadd.s32 %s175, %s173
        %s177 = smul.addr %s176, 4
        %s178 = scalar_lea.vmem %s0, %s177
      $region32: #{dense_block_forward.1} parent=27 // pred_fallthru
        _
    $region28: #{dense_block_forward.1} parent=5 // pred_fallthru
      _
    %p179 = scmp.le.s32.totalorder 1, %s10
    %p180 = scmp.lt.s32.totalorder %s10, 3
    %p181 = pnand %p179, %p180
    %p182 = pneg %p181
    // Predicated region
    $region33: #{dense_block_forward.1} parent=5 // pred_check
      _
    $region34: #{dense_block_forward.1} parent=5 // pred_check_branch
      %184 = sbr.rel (%p181) target = $region36
    $region35: #{dense_block_forward.1} parent=5 // pred_region
      %s185 = ssub.s32 %s10, 1
      %p186 = scmp.lt.s32.totalorder %s19, 1
      %s187 = scalar_select %p186, %s19, 1
      %p188 = scmp.lt.s32.totalorder %s20, 0
      %s189 = scalar_select %p188, %s20, 0
      %s190 = sadd.s32 %s189, %s187
      %s191 = smul.addr %s190, 4
      %s192 = scalar_lea.vmem %s0, %s191
      %p193 = pneg %p50
      %p194 = pneg %p47
      %p195 = pneg %p71
      %p196 = pneg %p68
      %p197 = pneg %p92
      %p198 = pneg %p89
      %p199 = pneg %p113
      %p200 = pneg %p110
      %p201 = pneg %p141
      %p202 = pneg %p138
      %p203 = scmp.lt.s32.totalorder %s19, 1
      %s204 = scalar_select %p203, %s19, 1
      %p205 = scmp.lt.s32.totalorder %s20, 0
      %s206 = scalar_select %p205, %s20, 0
      %s207 = smul.addr %s204, 2
      %s208 = sadd.s32 %s206, %s207
      %s209 = smul.addr %s208, 8
      %s210 = scalar_lea.vmem %s4, %s209
      %p211 = scmp.lt.s32.totalorder %s19, 1
      %s212 = scalar_select %p211, %s19, 1
      %p213 = scmp.lt.s32.totalorder %s20, 0
      %s214 = scalar_select %p213, %s20, 0
      %s215 = sadd.s32 %s214, %s212
      %s216 = smul.addr %s215, 4
      %s217 = scalar_lea.vmem %s0, %s216
      %p218 = scmp.lt.s32.totalorder %s19, 1
      %s219 = scalar_select %p218, %s19, 1
      %p220 = scmp.lt.s32.totalorder %s20, 0
      %s221 = scalar_select %p220, %s20, 0
      %s222 = smul.addr %s219, 2
      %s223 = sadd.s32 %s221, %s222
      %s224 = smul.addr %s223, 8
      %s225 = scalar_lea.vmem %s4, %s224
      %v226 = vld [vmem:[%s217] sm:$0xf]
      %228 = vrot.lane.b32.xlu0 %v226, 2
      %v229 = vpop.permute.xlu0 %228
      %vm231 = vcmask 15360
      %v232 = vsel %vm231, 0.0, %v229
      %v233 = vld [vmem:[%s1] sm:$0xff]
      %v234 = vld [vmem:[%s1 + $0x8] sm:$0xff]
      %v235 = vld [vmem:[%s2] sm:$0xff]
      %v236 = vld [vmem:[%s2 + $0x8] sm:$0xff]
      %vm237 = vcmask 31744
      %v239 = vsel %vm237, %v235, 0
      %v242 = vsel %vm237, %v236, 0
      %vm244 = vcmask 1043456
      %v246 = vsel %vm244, %v232, 0
      %248 = vmatprep.subr.mxu0 0.0
      %249 = vmatpush1.msra.mxu0 %v246
      %250 = vmatprep.subr.mxu0 0.0
      %251 = vmatpush1.msra.mxu0 0.0
      %252 = vmatprep.subr.mxu0 0.0
      %253 = vmatpush1.msra.mxu0 0.0
      %254 = vmatprep.subr.mxu0 0.0
      %255 = vmatpush1.msra.mxu0 0.0
      %256 = vmatprep.subr.mxu0 0.0
      %257 = vmatpush1.msra.mxu0 0.0
      %258 = vmatprep.subr.mxu0 0.0
      %259 = vmatpush1.msra.mxu0 0.0
      %260 = vmatprep.subr.mxu0 0.0
      %261 = vmatpush1.msra.mxu0 0.0
      %262 = vmatprep.subr.mxu0 0.0
      %263 = vmatpush1.msra.mxu0 0.0
      %264 = vmatprep.subr.mxu0 0.0
      %265 = vmatpush1.msra.mxu0 0.0
      %266 = vmatprep.subr.mxu0 0.0
      %267 = vmatpush1.msra.mxu0 0.0
      %268 = vmatprep.subr.mxu0 0.0
      %269 = vmatpush1.msra.mxu0 0.0
      %270 = vmatprep.subr.mxu0 0.0
      %271 = vmatpush1.msra.mxu0 0.0
      %272 = vmatprep.subr.mxu0 0.0
      %273 = vmatpush1.msra.mxu0 0.0
      %274 = vmatprep.subr.mxu0 0.0
      %275 = vmatpush1.msra.mxu0 0.0
      %276 = vmatprep.subr.mxu0 0.0
      %277 = vmatpush1.msra.mxu0 0.0
      %278 = vmatprep.subr.mxu0 0.0
      %279 = vmatpush1.msra.mxu0 0.0
      %280 = vmatprep.subr.mxu0 0.0
      %281 = vmatpush1.msra.mxu0 0.0
      %282 = vmatprep.subr.mxu0 0.0
      %283 = vmatpush1.msra.mxu0 0.0
      %284 = vmatprep.subr.mxu0 0.0
      %285 = vmatpush1.msra.mxu0 0.0
      %286 = vmatprep.subr.mxu0 0.0
      %287 = vmatpush1.msra.mxu0 0.0
      %288 = vmatprep.subr.mxu0 0.0
      %289 = vmatpush1.msra.mxu0 0.0
      %290 = vmatprep.subr.mxu0 0.0
      %291 = vmatpush1.msra.mxu0 0.0
      %292 = vmatprep.subr.mxu0 0.0
      %293 = vmatpush1.msra.mxu0 0.0
      %294 = vmatprep.subr.mxu0 0.0
      %295 = vmatpush1.msra.mxu0 0.0
      %296 = vmatprep.subr.mxu0 0.0
      %297 = vmatpush1.msra.mxu0 0.0
      %298 = vmatprep.subr.mxu0 0.0
      %299 = vmatpush1.msra.mxu0 0.0
      %300 = vmatprep.subr.mxu0 0.0
      %301 = vmatpush1.msra.mxu0 0.0
      %302 = vmatprep.subr.mxu0 0.0
      %303 = vmatpush1.msra.mxu0 0.0
      %304 = vmatprep.subr.mxu0 0.0
      %305 = vmatpush1.msra.mxu0 0.0
      %306 = vmatprep.subr.mxu0 0.0
      %307 = vmatpush1.msra.mxu0 0.0
      %308 = vmatprep.subr.mxu0 0.0
      %309 = vmatpush1.msra.mxu0 0.0
      %310 = vmatprep.subr.mxu0 0.0
      %311 = vmatpush1.msra.mxu0 0.0
      %312 = vmatprep.mubr.f32.mxu0 0.0
      %313 = vmatmul.mubr.f32.gmra.mrb[0].mxu0 %v239
      %v314 = vpop.f32.mrb[0].mxu0
      %v315 = vadd.f32 0.0, %v314
      %v316 = vpop.f32.mrb[0].mxu0
      %317 = vmatprep.mubr.f32.mxu0 0.0
      %318 = vmatmul.mubr.f32.gmra.mrb[0].mxu0 %v242
      %v319 = vpop.f32.mrb[0].mxu0
      %v320 = vadd.f32 0.0, %v319
      %v321 = vpop.f32.mrb[0].mxu0
      %322 = vdwg.mxu0
      %v324 = vsel %vm237, %v233, 0
      %v327 = vsel %vm237, %v234, 0
      %v329 = vsel %vm244, %v226, 0
      %331 = vmatprep.subr.mxu0 0.0
      %332 = vmatpush1.msra.mxu0 %v329
      %333 = vmatprep.subr.mxu0 0.0
      %334 = vmatpush1.msra.mxu0 0.0
      %335 = vmatprep.subr.mxu0 0.0
      %336 = vmatpush1.msra.mxu0 0.0
      %337 = vmatprep.subr.mxu0 0.0
      %338 = vmatpush1.msra.mxu0 0.0
      %339 = vmatprep.subr.mxu0 0.0
      %340 = vmatpush1.msra.mxu0 0.0
      %341 = vmatprep.subr.mxu0 0.0
      %342 = vmatpush1.msra.mxu0 0.0
      %343 = vmatprep.subr.mxu0 0.0
      %344 = vmatpush1.msra.mxu0 0.0
      %345 = vmatprep.subr.mxu0 0.0
      %346 = vmatpush1.msra.mxu0 0.0
      %347 = vmatprep.subr.mxu0 0.0
      %348 = vmatpush1.msra.mxu0 0.0
      %349 = vmatprep.subr.mxu0 0.0
      %350 = vmatpush1.msra.mxu0 0.0
      %351 = vmatprep.subr.mxu0 0.0
      %352 = vmatpush1.msra.mxu0 0.0
      %353 = vmatprep.subr.mxu0 0.0
      %354 = vmatpush1.msra.mxu0 0.0
      %355 = vmatprep.subr.mxu0 0.0
      %356 = vmatpush1.msra.mxu0 0.0
      %357 = vmatprep.subr.mxu0 0.0
      %358 = vmatpush1.msra.mxu0 0.0
      %359 = vmatprep.subr.mxu0 0.0
      %360 = vmatpush1.msra.mxu0 0.0
      %361 = vmatprep.subr.mxu0 0.0
      %362 = vmatpush1.msra.mxu0 0.0
      %363 = vmatprep.subr.mxu0 0.0
      %364 = vmatpush1.msra.mxu0 0.0
      %365 = vmatprep.subr.mxu0 0.0
      %366 = vmatpush1.msra.mxu0 0.0
      %367 = vmatprep.subr.mxu0 0.0
      %368 = vmatpush1.msra.mxu0 0.0
      %369 = vmatprep.subr.mxu0 0.0
      %370 = vmatpush1.msra.mxu0 0.0
      %371 = vmatprep.subr.mxu0 0.0
      %372 = vmatpush1.msra.mxu0 0.0
      %373 = vmatprep.subr.mxu0 0.0
      %374 = vmatpush1.msra.mxu0 0.0
      %375 = vmatprep.subr.mxu0 0.0
      %376 = vmatpush1.msra.mxu0 0.0
      %377 = vmatprep.subr.mxu0 0.0
      %378 = vmatpush1.msra.mxu0 0.0
      %379 = vmatprep.subr.mxu0 0.0
      %380 = vmatpush1.msra.mxu0 0.0
      %381 = vmatprep.subr.mxu0 0.0
      %382 = vmatpush1.msra.mxu0 0.0
      %383 = vmatprep.subr.mxu0 0.0
      %384 = vmatpush1.msra.mxu0 0.0
      %385 = vmatprep.subr.mxu0 0.0
      %386 = vmatpush1.msra.mxu0 0.0
      %387 = vmatprep.subr.mxu0 0.0
      %388 = vmatpush1.msra.mxu0 0.0
      %389 = vmatprep.subr.mxu0 0.0
      %390 = vmatpush1.msra.mxu0 0.0
      %391 = vmatprep.subr.mxu0 0.0
      %392 = vmatpush1.msra.mxu0 0.0
      %393 = vmatprep.subr.mxu0 0.0
      %394 = vmatpush1.msra.mxu0 0.0
      %395 = vmatprep.mubr.f32.mxu0 0.0
      %396 = vmatmul.mubr.f32.gmra.mrb[0].mxu0 %v324
      %v397 = vpop.f32.mrb[0].mxu0
      %v398 = vadd.f32 %v315, %v397
      %v399 = vpop.f32.mrb[0].mxu0
      %400 = vmatprep.mubr.f32.mxu0 0.0
      %401 = vmatmul.mubr.f32.gmra.mrb[0].mxu0 %v327
      %v402 = vpop.f32.mrb[0].mxu0
      %v403 = vadd.f32 %v320, %v402
      %v404 = vpop.f32.mrb[0].mxu0
      %405 = vdwg.mxu0
      %v406 = vld [vmem:[%s3] sm:$0xff]
      %v407 = vld [vmem:[%s3 + $0x8] sm:$0xff]
      %409 = vset.pattern.permute.xlu0 0
      %410 = vperm.xlu0 %409, %v406
      %v411 = vpop.permute.xlu0 %410
      %414 = vset.pattern.permute.xlu0 0
      %415 = vperm.xlu0 %414, %v407
      %v416 = vpop.permute.xlu0 %415
      %v418 = vadd.f32 %v398, %v411
      %v419 = vadd.f32 %v403, %v416
      %v420 = vtanh.pop %v418
      %v421 = vxor.u32 %v419, 2147483648
      %v422 = vmul.f32 %v421, 1.442695
      %v423 = vpow.pop %v422
      %v424 = vadd.f32 %v423, 1.0
      %v425 = vrcp.pop %v424
      %v426 = vmul.f32 1.0, %v425
      %v427 = vmul.f32 %v420, %v426
      %vm428 = vcmask 125952
      %429 = vst.msk [vmem:[%s225] sm:$0xf] %vm428, %v226
      %vm430 = vcmask 130048
      %431 = vst.msk [vmem:[%s225 + $0x4] sm:$0xff] %vm430, %v427
      %p432 = scmp.lt.s32.totalorder %s19, 1
      %s433 = scalar_select %p432, %s19, 1
      %p434 = scmp.lt.s32.totalorder %s20, 0
      %s435 = scalar_select %p434, %s20, 0
      %s436 = smul.addr %s433, 2
      %s437 = sadd.s32 %s435, %s436
      %s438 = smul.addr %s437, 8
      %s439 = scalar_lea.vmem %s4, %s438
      // Predicated region
      $region37: #{dense_block_forward.1} parent=35 // pred_check
        %p440 = pneg %p138
      $region38: #{dense_block_forward.1} parent=35 // pred_check_branch
        %442 = sbr.rel (%p440) target = $region40
      $region39: #{dense_block_forward.1} parent=35 // pred_region
        _
      $region40: #{dense_block_forward.1} parent=35 // pred_fallthru
        _
    $region36: #{dense_block_forward.1} parent=5 // pred_fallthru
      _
    %p443 = scmp.le.s32.totalorder 2, %s10
    // Predicated region
    $region41: #{dense_block_forward.1} parent=5 // pred_check
      %p444 = pneg %p443
    $region42: #{dense_block_forward.1} parent=5 // pred_check_branch
      %446 = sbr.rel (%p444) target = $region44
    $region43: #{dense_block_forward.1} parent=5 // pred_region
      %s447 = ssub.s32 %s10, 2
      // Predicated region
      $region45: #{dense_block_forward.1} parent=43 // pred_check
        %p448 = pneg %p144
      $region46: #{dense_block_forward.1} parent=43 // pred_check_branch
        %450 = sbr.rel (%p448) target = $region48
      $region47: #{dense_block_forward.1} parent=43 // pred_region
        %p451 = scmp.lt.s32.totalorder %s21, 1
        %s452 = scalar_select %p451, %s21, 1
        %p453 = scmp.lt.s32.totalorder %s22, 0
        %s454 = scalar_select %p453, %s22, 0
        %s455 = smul.addr %s452, 2
        %s456 = sadd.s32 %s454, %s455
        %s457 = smul.addr %s456, 8
        %s458 = scalar_lea.vmem %s4, %s457
      $region48: #{dense_block_forward.1} parent=43 // pred_fallthru
        _
    $region44: #{dense_block_forward.1} parent=5 // pred_fallthru
      _
  $region6: #{dense_block_forward.1} parent=0 // loop_footer
    %s14 = sadd.s32 1, %s10
  $region7: #{dense_block_forward.1} parent=0 // loop_footer_branch
    %9 = sbr.rel target = $region3
  $region8: #{dense_block_forward.1} parent=0 // loop_exit
    _

</llo_original>
